<compile_context>
chip_gen: v7x
topology: tpu7x:2x2x1
jax: 0.10.0
libtpu: 0.0.40
codegen_flags: <defaults>
</compile_context>

<pallas_src>
import jax
import jax.numpy as jnp
from jax.experimental import pallas as pl
from jax.experimental.pallas import tpu as pltpu


def _chroma_upsampling_kernel(c0_ref, c1_ref, crep_ref, x_ref, o_ref):
    # c0/c1/crep: (tw, 2tw) 0/1 column scatter matrices (resident, const index_map)
    #   c0[j, 2j] = 1, c1[j, 2j+1] = 1, crep = c0 + c1
    # x_ref: (1, 6, th, tw)      input block (NCHW)
    # o_ref: (1, 3, 2, th, 2tw)  output block: [channel, row-parity di, i, q]
    cdt = c0_ref.dtype
    odt = o_ref.dtype
    th = x_ref.shape[2]

    p0 = x_ref[0, 0].astype(cdt)
    p1 = x_ref[0, 1].astype(cdt)
    p2 = x_ref[0, 2].astype(cdt)
    p3 = x_ref[0, 3].astype(cdt)
    cbcr = jnp.concatenate([x_ref[0, 4], x_ref[0, 5]], axis=0).astype(cdt)  # (2th, tw)

    def mm(a, b):
        return jnp.dot(a, b, preferred_element_type=jnp.float32)

    # PixelShuffle along width, batched over row parity:
    #   [p0; p2] @ C0 + [p1; p3] @ C1 = [even_rows ; odd_rows]   (2th, 2tw)
    even_lhs = jnp.concatenate([p0, p2], axis=0)                 # (2th, tw)
    odd_lhs = jnp.concatenate([p1, p3], axis=0)                  # (2th, tw)
    y_rows = (mm(even_lhs, c0_ref[...]) + mm(odd_lhs, c1_ref[...])).astype(odt)

    # Nearest-neighbour column replication for chroma, batched over (Cb, Cr).
    c_rows = mm(cbcr, crep_ref[...]).astype(odt)                 # (2th, 2tw)

    top = y_rows[:th]
    bot = y_rows[th:]
    cb_up = c_rows[:th]
    cr_up = c_rows[th:]

    # Dense (th, 2tw) stores; the row interleave happens via the output layout.
    o_ref[0, 0, 0] = top      # Y, even output rows
    o_ref[0, 0, 1] = bot      # Y, odd output rows
    o_ref[0, 1, 0] = cb_up    # Cb (even == odd row, nearest neighbour)
    o_ref[0, 1, 1] = cb_up
    o_ref[0, 2, 0] = cr_up    # Cr
    o_ref[0, 2, 1] = cr_up


def _pick_tile(dim, target, multiple):
    """Largest divisor of `dim` that is <= target and a multiple of `multiple`;
    fall back to the full dim (always legal for BlockSpec)."""
    if dim <= target:
        return dim
    start = target - (target % multiple)
    for t in range(start, 0, -multiple):
        if dim % t == 0:
            return t
    return dim


def chroma_upsampling(ycbcr, *, th_target=256, tw_target=256):
    """ycbcr: (B, 6, h, w)  ->  (B, 2h, 2w, 3), matching the torch module."""
    B, C, h, w = ycbcr.shape
    assert C == 6, "expected 6 input channels (4 Y sub-planes + Cb + Cr)"

    out_dtype = ycbcr.dtype
    compute_dtype = (ycbcr.dtype
                     if jnp.issubdtype(ycbcr.dtype, jnp.floating)
                     else jnp.float32)

    # Spatial tile sizes: th multiple of 8, tw multiple of 128 (=> 2*tw lane-dense
    # output), or the full extent for small inputs.
    th = _pick_tile(h, th_target, 8)
    tw = _pick_tile(w, tw_target, 128)

    # 0/1 column scatter matrices (tw, 2tw), built once in input dtype:
    #   C0[j, 2j] = 1, C1[j, 2j+1] = 1, Crep = C0 + C1 (nearest-neighbour cols)
    j_in = jnp.arange(tw, dtype=jnp.int32)[:, None]
    q_out = jnp.arange(2 * tw, dtype=jnp.int32)[None, :]
    c0 = (q_out == 2 * j_in).astype(compute_dtype)
    c1 = (q_out == 2 * j_in + 1).astype(compute_dtype)
    crep = c0 + c1

    grid = (B, h // th, w // tw)
    const_spec = pl.BlockSpec((tw, 2 * tw), lambda b, i, j: (0, 0))

    out_tmp = pl.pallas_call(
        _chroma_upsampling_kernel,
        out_shape=jax.ShapeDtypeStruct((B, 3, 2, h, 2 * w), out_dtype),
        grid=grid,
        in_specs=[
            const_spec, const_spec, const_spec,
            pl.BlockSpec((1, 6, th, tw), lambda b, i, j: (b, 0, i, j)),
        ],
        out_specs=pl.BlockSpec((1, 3, 2, th, 2 * tw),
                               lambda b, i, j: (b, 0, 0, i, j)),
        compiler_params=pltpu.CompilerParams(
            dimension_semantics=("parallel", "parallel", "parallel")),
    )(c0, c1, crep, ycbcr)

    # out_tmp[b, c, di, i, q] = channel c at output row 2i+di, column q.
    # One XLA transpose realizes BOTH the row interleave and torch's trailing
    # NCHW -> NHWC permute; the (i, di) merge afterwards is a free reshape.
    out = jnp.transpose(out_tmp, (0, 3, 2, 4, 1)).reshape(B, 2 * h, 2 * w, 3)
    return out


def _chroma_upsampling_ref(ycbcr):
    """Pure-JAX reference mirroring the torch module."""
    B, _, h, w = ycbcr.shape
    y = (ycbcr[:, :4]
         .reshape(B, 2, 2, h, w)
         .transpose(0, 3, 1, 4, 2)
         .reshape(B, 2 * h, 2 * w))
    cb = jnp.repeat(jnp.repeat(ycbcr[:, 4], 2, axis=1), 2, axis=2)
    cr = jnp.repeat(jnp.repeat(ycbcr[:, 5], 2, axis=1), 2, axis=2)
    return jnp.stack([y, cb, cr], axis=-1)


if __name__ == "__main__":
    key = jax.random.PRNGKey(0)
    k0, k1 = jax.random.split(key)

    # Primary test: bf16 (MXU-native path), batch=2, 16x16 half-res planes.
    ycbcr = jax.random.normal(k0, (2, 6, 16, 16), dtype=jnp.bfloat16)
    out = jax.block_until_ready(chroma_upsampling(ycbcr))
    ref = _chroma_upsampling_ref(ycbcr)
    assert out.shape == (2, 32, 32, 3), out.shape
    assert out.dtype == ycbcr.dtype, out.dtype
    assert jnp.allclose(out.astype(jnp.float32), ref.astype(jnp.float32),
                        atol=1e-6, rtol=1e-6)

    # Secondary test: f32, non-square spatial extent.
    ycbcr2 = jax.random.normal(k1, (1, 6, 8, 32), dtype=jnp.float32)
    out2 = jax.block_until_ready(chroma_upsampling(ycbcr2))
    ref2 = _chroma_upsampling_ref(ycbcr2)
    assert out2.shape == (1, 16, 64, 3), out2.shape
    assert jnp.allclose(out2, ref2, atol=1e-6, rtol=1e-6)

    print("KERNEL_OK")
</pallas_src>

<mosaic_0001>
module attributes {stable_mosaic.version = 11 : i64} {
  func.func @_chroma_upsampling_kernel(%arg0: i32, %arg1: i32, %arg2: i32, %arg3: memref<16x32xbf16, #tpu.memory_space<vmem>>, %arg4: memref<16x32xbf16, #tpu.memory_space<vmem>>, %arg5: memref<16x32xbf16, #tpu.memory_space<vmem>>, %arg6: memref<1x6x16x16xbf16, #tpu.memory_space<vmem>>, %arg7: memref<1x3x2x16x32xbf16, #tpu.memory_space<vmem>>) attributes {dimension_semantics = [#tpu.dimension_semantics<parallel>, #tpu.dimension_semantics<parallel>, #tpu.dimension_semantics<parallel>], iteration_bounds = array<i64: 2, 1, 1>, scalar_prefetch = 0 : i64, scratch_operands = 0 : i64, tpu.core_type = #tpu.core_type<tc>, window_params = [{pipeline_mode = #tpu.pipeline_mode<synchronous>, transform_indices = @transform_0, window_bounds = array<i64: 16, 32>}, {pipeline_mode = #tpu.pipeline_mode<synchronous>, transform_indices = @transform_1, window_bounds = array<i64: 16, 32>}, {pipeline_mode = #tpu.pipeline_mode<synchronous>, transform_indices = @transform_2, window_bounds = array<i64: 16, 32>}, {transform_indices = @transform_3, window_bounds = array<i64: 1, 6, 16, 16>}, {transform_indices = @transform_4, window_bounds = array<i64: 1, 3, 2, 16, 32>}]} {
    %c0 = arith.constant 0 : index
    %c0_0 = arith.constant 0 : index
    %c0_1 = arith.constant 0 : index
    %c0_2 = arith.constant 0 : index
    %0 = vector.load %arg6[%c0, %c0_0, %c0_1, %c0_2] : memref<1x6x16x16xbf16, #tpu.memory_space<vmem>>, vector<1x1x16x16xbf16>
    %1 = vector.shape_cast %0 : vector<1x1x16x16xbf16> to vector<16x16xbf16>
    %c0_3 = arith.constant 0 : index
    %c1 = arith.constant 1 : index
    %c0_4 = arith.constant 0 : index
    %c0_5 = arith.constant 0 : index
    %2 = vector.load %arg6[%c0_3, %c1, %c0_4, %c0_5] : memref<1x6x16x16xbf16, #tpu.memory_space<vmem>>, vector<1x1x16x16xbf16>
    %3 = vector.shape_cast %2 : vector<1x1x16x16xbf16> to vector<16x16xbf16>
    %c0_6 = arith.constant 0 : index
    %c2 = arith.constant 2 : index
    %c0_7 = arith.constant 0 : index
    %c0_8 = arith.constant 0 : index
    %4 = vector.load %arg6[%c0_6, %c2, %c0_7, %c0_8] : memref<1x6x16x16xbf16, #tpu.memory_space<vmem>>, vector<1x1x16x16xbf16>
    %5 = vector.shape_cast %4 : vector<1x1x16x16xbf16> to vector<16x16xbf16>
    %c0_9 = arith.constant 0 : index
    %c3 = arith.constant 3 : index
    %c0_10 = arith.constant 0 : index
    %c0_11 = arith.constant 0 : index
    %6 = vector.load %arg6[%c0_9, %c3, %c0_10, %c0_11] : memref<1x6x16x16xbf16, #tpu.memory_space<vmem>>, vector<1x1x16x16xbf16>
    %7 = vector.shape_cast %6 : vector<1x1x16x16xbf16> to vector<16x16xbf16>
    %c0_12 = arith.constant 0 : index
    %c4 = arith.constant 4 : index
    %c0_13 = arith.constant 0 : index
    %c0_14 = arith.constant 0 : index
    %8 = vector.load %arg6[%c0_12, %c4, %c0_13, %c0_14] : memref<1x6x16x16xbf16, #tpu.memory_space<vmem>>, vector<1x1x16x16xbf16>
    %9 = vector.shape_cast %8 : vector<1x1x16x16xbf16> to vector<16x16xbf16>
    %c0_15 = arith.constant 0 : index
    %c5 = arith.constant 5 : index
    %c0_16 = arith.constant 0 : index
    %c0_17 = arith.constant 0 : index
    %10 = vector.load %arg6[%c0_15, %c5, %c0_16, %c0_17] : memref<1x6x16x16xbf16, #tpu.memory_space<vmem>>, vector<1x1x16x16xbf16>
    %11 = vector.shape_cast %10 : vector<1x1x16x16xbf16> to vector<16x16xbf16>
    %12 = tpu.concatenate %9, %11 in 0 : vector<16x16xbf16>, vector<16x16xbf16> -> vector<32x16xbf16>
    %13 = tpu.concatenate %1, %5 in 0 : vector<16x16xbf16>, vector<16x16xbf16> -> vector<32x16xbf16>
    %14 = tpu.concatenate %3, %7 in 0 : vector<16x16xbf16>, vector<16x16xbf16> -> vector<32x16xbf16>
    %c0_18 = arith.constant 0 : index
    %c0_19 = arith.constant 0 : index
    %15 = vector.load %arg3[%c0_18, %c0_19] : memref<16x32xbf16, #tpu.memory_space<vmem>>, vector<16x32xbf16>
    %cst = arith.constant dense<0.000000e+00> : vector<32x32xf32>
    %16 = tpu.matmul %13, %15, %cst {dimension_numbers = #tpu.dot_dimension_numbers<[1], [0], [0], [1], [0, 0, 1, 1], [], []>} : vector<32x16xbf16>, vector<16x32xbf16>, vector<32x32xf32> -> vector<32x32xf32>
    %c0_20 = arith.constant 0 : index
    %c0_21 = arith.constant 0 : index
    %17 = vector.load %arg4[%c0_20, %c0_21] : memref<16x32xbf16, #tpu.memory_space<vmem>>, vector<16x32xbf16>
    %cst_22 = arith.constant dense<0.000000e+00> : vector<32x32xf32>
    %18 = tpu.matmul %14, %17, %cst_22 {dimension_numbers = #tpu.dot_dimension_numbers<[1], [0], [0], [1], [0, 0, 1, 1], [], []>} : vector<32x16xbf16>, vector<16x32xbf16>, vector<32x32xf32> -> vector<32x32xf32>
    %19 = arith.addf %16, %18 : vector<32x32xf32>
    %20 = arith.truncf %19 : vector<32x32xf32> to vector<32x32xbf16>
    %c0_23 = arith.constant 0 : index
    %c0_24 = arith.constant 0 : index
    %21 = vector.load %arg5[%c0_23, %c0_24] : memref<16x32xbf16, #tpu.memory_space<vmem>>, vector<16x32xbf16>
    %cst_25 = arith.constant dense<0.000000e+00> : vector<32x32xf32>
    %22 = tpu.matmul %12, %21, %cst_25 {dimension_numbers = #tpu.dot_dimension_numbers<[1], [0], [0], [1], [0, 0, 1, 1], [], []>} : vector<32x16xbf16>, vector<16x32xbf16>, vector<32x32xf32> -> vector<32x32xf32>
    %23 = arith.truncf %22 : vector<32x32xf32> to vector<32x32xbf16>
    %24 = vector.extract_strided_slice %20 {offsets = [0, 0], sizes = [16, 32], strides = [1, 1]} : vector<32x32xbf16> to vector<16x32xbf16>
    %25 = vector.extract_strided_slice %20 {offsets = [16, 0], sizes = [16, 32], strides = [1, 1]} : vector<32x32xbf16> to vector<16x32xbf16>
    %26 = vector.extract_strided_slice %23 {offsets = [0, 0], sizes = [16, 32], strides = [1, 1]} : vector<32x32xbf16> to vector<16x32xbf16>
    %27 = vector.extract_strided_slice %23 {offsets = [16, 0], sizes = [16, 32], strides = [1, 1]} : vector<32x32xbf16> to vector<16x32xbf16>
    %c0_26 = arith.constant 0 : index
    %c0_27 = arith.constant 0 : index
    %c0_28 = arith.constant 0 : index
    %c0_29 = arith.constant 0 : index
    %c0_30 = arith.constant 0 : index
    %28 = vector.load %arg7[%c0_26, %c0_27, %c0_28, %c0_29, %c0_30] : memref<1x3x2x16x32xbf16, #tpu.memory_space<vmem>>, vector<1x1x1x16x32xbf16>
    %29 = vector.shape_cast %28 : vector<1x1x1x16x32xbf16> to vector<16x32xbf16>
    %30 = vector.shape_cast %24 : vector<16x32xbf16> to vector<1x1x1x16x32xbf16>
    tpu.vector_store %arg7[%c0_26, %c0_27, %c0_28, %c0_29, %c0_30], %30 {strides = array<i32>} : memref<1x3x2x16x32xbf16, #tpu.memory_space<vmem>>, vector<1x1x1x16x32xbf16>,
    %c0_31 = arith.constant 0 : index
    %c0_32 = arith.constant 0 : index
    %c1_33 = arith.constant 1 : index
    %c0_34 = arith.constant 0 : index
    %c0_35 = arith.constant 0 : index
    %31 = vector.load %arg7[%c0_31, %c0_32, %c1_33, %c0_34, %c0_35] : memref<1x3x2x16x32xbf16, #tpu.memory_space<vmem>>, vector<1x1x1x16x32xbf16>
    %32 = vector.shape_cast %31 : vector<1x1x1x16x32xbf16> to vector<16x32xbf16>
    %33 = vector.shape_cast %25 : vector<16x32xbf16> to vector<1x1x1x16x32xbf16>
    tpu.vector_store %arg7[%c0_31, %c0_32, %c1_33, %c0_34, %c0_35], %33 {strides = array<i32>} : memref<1x3x2x16x32xbf16, #tpu.memory_space<vmem>>, vector<1x1x1x16x32xbf16>,
    %c0_36 = arith.constant 0 : index
    %c1_37 = arith.constant 1 : index
    %c0_38 = arith.constant 0 : index
    %c0_39 = arith.constant 0 : index
    %c0_40 = arith.constant 0 : index
    %34 = vector.load %arg7[%c0_36, %c1_37, %c0_38, %c0_39, %c0_40] : memref<1x3x2x16x32xbf16, #tpu.memory_space<vmem>>, vector<1x1x1x16x32xbf16>
    %35 = vector.shape_cast %34 : vector<1x1x1x16x32xbf16> to vector<16x32xbf16>
    %36 = vector.shape_cast %26 : vector<16x32xbf16> to vector<1x1x1x16x32xbf16>
    tpu.vector_store %arg7[%c0_36, %c1_37, %c0_38, %c0_39, %c0_40], %36 {strides = array<i32>} : memref<1x3x2x16x32xbf16, #tpu.memory_space<vmem>>, vector<1x1x1x16x32xbf16>,
    %c0_41 = arith.constant 0 : index
    %c1_42 = arith.constant 1 : index
    %c1_43 = arith.constant 1 : index
    %c0_44 = arith.constant 0 : index
    %c0_45 = arith.constant 0 : index
    %37 = vector.load %arg7[%c0_41, %c1_42, %c1_43, %c0_44, %c0_45] : memref<1x3x2x16x32xbf16, #tpu.memory_space<vmem>>, vector<1x1x1x16x32xbf16>
    %38 = vector.shape_cast %37 : vector<1x1x1x16x32xbf16> to vector<16x32xbf16>
    %39 = vector.shape_cast %26 : vector<16x32xbf16> to vector<1x1x1x16x32xbf16>
    tpu.vector_store %arg7[%c0_41, %c1_42, %c1_43, %c0_44, %c0_45], %39 {strides = array<i32>} : memref<1x3x2x16x32xbf16, #tpu.memory_space<vmem>>, vector<1x1x1x16x32xbf16>,
    %c0_46 = arith.constant 0 : index
    %c2_47 = arith.constant 2 : index
    %c0_48 = arith.constant 0 : index
    %c0_49 = arith.constant 0 : index
    %c0_50 = arith.constant 0 : index
    %40 = vector.load %arg7[%c0_46, %c2_47, %c0_48, %c0_49, %c0_50] : memref<1x3x2x16x32xbf16, #tpu.memory_space<vmem>>, vector<1x1x1x16x32xbf16>
    %41 = vector.shape_cast %40 : vector<1x1x1x16x32xbf16> to vector<16x32xbf16>
    %42 = vector.shape_cast %27 : vector<16x32xbf16> to vector<1x1x1x16x32xbf16>
    tpu.vector_store %arg7[%c0_46, %c2_47, %c0_48, %c0_49, %c0_50], %42 {strides = array<i32>} : memref<1x3x2x16x32xbf16, #tpu.memory_space<vmem>>, vector<1x1x1x16x32xbf16>,
    %c0_51 = arith.constant 0 : index
    %c2_52 = arith.constant 2 : index
    %c1_53 = arith.constant 1 : index
    %c0_54 = arith.constant 0 : index
    %c0_55 = arith.constant 0 : index
    %43 = vector.load %arg7[%c0_51, %c2_52, %c1_53, %c0_54, %c0_55] : memref<1x3x2x16x32xbf16, #tpu.memory_space<vmem>>, vector<1x1x1x16x32xbf16>
    %44 = vector.shape_cast %43 : vector<1x1x1x16x32xbf16> to vector<16x32xbf16>
    %45 = vector.shape_cast %27 : vector<16x32xbf16> to vector<1x1x1x16x32xbf16>
    tpu.vector_store %arg7[%c0_51, %c2_52, %c1_53, %c0_54, %c0_55], %45 {strides = array<i32>} : memref<1x3x2x16x32xbf16, #tpu.memory_space<vmem>>, vector<1x1x1x16x32xbf16>,
    return
  }
  func.func @transform_0(%arg0: i32, %arg1: i32, %arg2: i32) -> (i32, i32) {
    %c0_i32 = arith.constant 0 : i32
    %c0_i32_0 = arith.constant 0 : i32
    %c0_i32_1 = arith.constant 0 : i32
    return %c0_i32, %c0_i32_0 : i32, i32
  }
  func.func @transform_1(%arg0: i32, %arg1: i32, %arg2: i32) -> (i32, i32) {
    %c0_i32 = arith.constant 0 : i32
    %c0_i32_0 = arith.constant 0 : i32
    %c0_i32_1 = arith.constant 0 : i32
    return %c0_i32, %c0_i32_0 : i32, i32
  }
  func.func @transform_2(%arg0: i32, %arg1: i32, %arg2: i32) -> (i32, i32) {
    %c0_i32 = arith.constant 0 : i32
    %c0_i32_0 = arith.constant 0 : i32
    %c0_i32_1 = arith.constant 0 : i32
    return %c0_i32, %c0_i32_0 : i32, i32
  }
  func.func @transform_3(%arg0: i32, %arg1: i32, %arg2: i32) -> (i32, i32, i32, i32) {
    %c0_i32 = arith.constant 0 : i32
    %c0_i32_0 = arith.constant 0 : i32
    return %arg0, %c0_i32, %arg1, %arg2 : i32, i32, i32, i32
  }
  func.func @transform_4(%arg0: i32, %arg1: i32, %arg2: i32) -> (i32, i32, i32, i32, i32) {
    %c0_i32 = arith.constant 0 : i32
    %c0_i32_0 = arith.constant 0 : i32
    %c0_i32_1 = arith.constant 0 : i32
    return %arg0, %c0_i32, %c0_i32_0, %arg1, %arg2 : i32, i32, i32, i32, i32
  }
}

</mosaic_0001>

<llo_original>
// kernel: tpu_custom_call.1
$region0: #{tpu_custom_call.1}
  #allocation0 [shape = 'u32[]', space=smem, size = 0x4, offset = 0x4, fixed_abs, tag = 'smem constant byte address 0x4 - core index']
  #allocation1 [shape = 'u32[144,128]{1,0:T(1,128)}', space=vmem, size = 0x12000, scoped, tag = 'internal scratch']
  %s0 = inlined_call_operand.hbm [shape: bf16[16,32], index: 0, kind: input, shape index: {}]
  %s1 = inlined_call_operand.hbm [shape: bf16[16,32], index: 1, kind: input, shape index: {}]
  %s2 = inlined_call_operand.hbm [shape: bf16[16,32], index: 2, kind: input, shape index: {}]
  %s3 = inlined_call_operand.hbm [shape: bf16[2,6,16,16], index: 3, kind: input, shape index: {}]
  %s4 = inlined_call_operand.hbm [shape: bf16[2,3,2,16,32], index: 4, kind: output, shape index: {}]
  %s5 = sld [smem:[#allocation0]]
  $region65: #{tpu_custom_call.1} parent=0
    _
  %s7 = ssub.s32 1, %s5
  %s8 = scalar_select 0, %s7, %s5
  $region1: #{tpu_custom_call.1} parent=0
    #allocation2 [shape = 'u8[4096]{0}', space=vmem, size = 0x1000, scoped, tag = 'input window, operand 0, single buffered']
    #allocation3 [shape = 's32[2]{0}', space=sflag, size = 0x8, scoped, tag = 'scoped memory for tpu_custom_call.1']
    #allocation4 [shape = 's32[2]{0}', space=sflag, size = 0x8, scoped, tag = 'scoped memory for tpu_custom_call.1']
    #allocation5 [shape = 'u8[4096]{0}', space=vmem, size = 0x1000, scoped, tag = 'input window, operand 1, single buffered']
    #allocation6 [shape = 's32[1]{0}', space=sflag, size = 0x4, scoped, tag = 'scoped memory for tpu_custom_call.1']
    #allocation7 [shape = 'u8[4096]{0}', space=vmem, size = 0x1000, scoped, tag = 'input window, operand 2, single buffered']
    #allocation8 [shape = 'u8[49152]{0}', space=vmem, size = 0xc000, scoped, tag = 'input window, operand 3']
    #allocation9 [shape = 's32[2]{0}', space=sflag, size = 0x8, scoped, tag = 'scoped memory for tpu_custom_call.1']
    #allocation10 [shape = 'u8[49152]{0}', space=vmem, size = 0xc000, scoped, tag = 'output window, operand 0']
    %9 = vsyncpa [#allocation3], 0
    %10 = vsyncpa [#allocation6], 0
    %11 = vsyncpa [#allocation9], 0
    %s12 = scalar_lea.sflag [#allocation9], 1
    %13 = vsyncpa %s12, 0
    %14 = vsyncpa [#allocation4], 0
    %s15 = scalar_lea.sflag [#allocation4], 1
    %16 = vsyncpa %s15, 0
    loop: start=0, step=1, limit=4
    $region2: #{tpu_custom_call.1} parent=1 // loop_pre_header
      _
    $region3: #{tpu_custom_call.1} parent=1 // loop_header
      %s18 = sphi 0, %s22
      %p19 = scmp.ge.s32.totalorder %s18, 4
      %s25 = sphi 0, %s44
      %s26 = sphi 0, %s40
      %s27 = sphi 0, %s36
      %s28 = sphi 0, %s25
      %s29 = sphi 0, %s26
      %s30 = sphi 0, %s27
      %s31 = sphi 0, %s28
      %s32 = sphi 0, %s29
      %s33 = sphi 0, %s30
      %s45 = sphi 0, %s45
      %s47 = sphi 0, %s45
      %s48 = sphi 0, %s47
      %s62 = sphi 0, %s48
      %s66 = sphi 0, %s66
      %s68 = sphi 0, %s66
      %s69 = sphi 0, %s68
      %s83 = sphi 0, %s69
      %s87 = sphi 0, %s87
      %s89 = sphi 0, %s87
      %s90 = sphi 0, %s89
      %s104 = sphi 0, %s90
      %s114 = sphi 0, %s116
      %s117 = sphi 0, %s114
      %s118 = sphi 0, %s117
      %s134 = sphi 0, %s118
      %s144 = sphi 0, %s146
      %s147 = sphi 0, %s144
      %s148 = sphi 0, %s147
      %s164 = sphi 0, %s148
    $region4: #{tpu_custom_call.1} parent=1 // loop_header_branch
      %21 = sbr.rel (%p19) target = $region8
    $region5: #{tpu_custom_call.1} parent=1 // loop_body
      %s23 = ssub.s32 %s18, 1
      %s24 = ssub.s32 %s18, 2
      %s34 = sadd.s32 1, %s27
      %p35 = scmp.ge.s32.totalorder %s34, 1
      %s36 = scalar_select %p35, 0, %s34
      %s37 = sadd.s32 1, %s26
      %s38 = scalar_select %p35, %s37, %s26
      %p39 = scmp.ge.s32.totalorder %s38, 1
      %s40 = scalar_select %p39, 0, %s38
      %s41 = sadd.s32 1, %s25
      %s42 = scalar_select %p39, %s41, %s25
      %p43 = scmp.ge.s32.totalorder %s42, 2
      %s44 = scalar_select %p43, 0, %s42
      %s46 = sadd.s32 %s45, 1
      %p49 = scmp.eq.s32.totalorder %s18, 1
      %p50 = scmp.ne.s32.totalorder %s45, %s47
      %p51 = scmp.eq.s32.totalorder %s18, 0
      %p52 = por %p50, %p51
      %p53 = scmp.ne.s32.totalorder %s45, %s47
      %p54 = scmp.eq.s32.totalorder %s23, 1
      %p55 = por %p53, %p54
      %p56 = scmp.ne.s32.totalorder %s47, %s48
      %p57 = scmp.eq.s32.totalorder %s23, 0
      %p58 = por %p56, %p57
      %p59 = scmp.ne.s32.totalorder %s47, %s48
      %p60 = scmp.eq.s32.totalorder %s24, 1
      %p61 = por %p59, %p60
      %p63 = scmp.ne.s32.totalorder %s48, %s62
      %p64 = scmp.eq.s32.totalorder %s24, 0
      %p65 = por %p63, %p64
      %s67 = sadd.s32 %s66, 1
      %p70 = scmp.eq.s32.totalorder %s18, 1
      %p71 = scmp.ne.s32.totalorder %s66, %s68
      %p72 = scmp.eq.s32.totalorder %s18, 0
      %p73 = por %p71, %p72
      %p74 = scmp.ne.s32.totalorder %s66, %s68
      %p75 = scmp.eq.s32.totalorder %s23, 1
      %p76 = por %p74, %p75
      %p77 = scmp.ne.s32.totalorder %s68, %s69
      %p78 = scmp.eq.s32.totalorder %s23, 0
      %p79 = por %p77, %p78
      %p80 = scmp.ne.s32.totalorder %s68, %s69
      %p81 = scmp.eq.s32.totalorder %s24, 1
      %p82 = por %p80, %p81
      %p84 = scmp.ne.s32.totalorder %s69, %s83
      %p85 = scmp.eq.s32.totalorder %s24, 0
      %p86 = por %p84, %p85
      %s88 = sadd.s32 %s87, 1
      %p91 = scmp.eq.s32.totalorder %s18, 1
      %p92 = scmp.ne.s32.totalorder %s87, %s89
      %p93 = scmp.eq.s32.totalorder %s18, 0
      %p94 = por %p92, %p93
      %p95 = scmp.ne.s32.totalorder %s87, %s89
      %p96 = scmp.eq.s32.totalorder %s23, 1
      %p97 = por %p95, %p96
      %p98 = scmp.ne.s32.totalorder %s89, %s90
      %p99 = scmp.eq.s32.totalorder %s23, 0
      %p100 = por %p98, %p99
      %p101 = scmp.ne.s32.totalorder %s89, %s90
      %p102 = scmp.eq.s32.totalorder %s24, 1
      %p103 = por %p101, %p102
      %p105 = scmp.ne.s32.totalorder %s90, %s104
      %p106 = scmp.eq.s32.totalorder %s24, 0
      %p107 = por %p105, %p106
      %s108 = ssub.s32 %s25, %s44
      %s109 = ssub.s32 %s26, %s40
      %s110 = sor.u32 %s108, %s109
      %s111 = ssub.s32 %s27, %s36
      %s112 = sor.u32 %s110, %s111
      %p113 = scmp.eq.s32.totalorder %s112, 0
      %s115 = sadd.s32 %s114, 1
      %s116 = scalar_select %p113, %s114, %s115
      %p119 = pneg %p113
      %p120 = scmp.eq.s32.totalorder %s18, 1
      %p121 = por %p119, %p120
      %p122 = scmp.ne.s32.totalorder %s114, %s117
      %p123 = scmp.eq.s32.totalorder %s18, 0
      %p124 = por %p122, %p123
      %p125 = scmp.ne.s32.totalorder %s114, %s117
      %p126 = scmp.eq.s32.totalorder %s23, 1
      %p127 = por %p125, %p126
      %p128 = scmp.ne.s32.totalorder %s117, %s118
      %p129 = scmp.eq.s32.totalorder %s23, 0
      %p130 = por %p128, %p129
      %p131 = scmp.ne.s32.totalorder %s117, %s118
      %p132 = scmp.eq.s32.totalorder %s24, 1
      %p133 = por %p131, %p132
      %p135 = scmp.ne.s32.totalorder %s118, %s134
      %p136 = scmp.eq.s32.totalorder %s24, 0
      %p137 = por %p135, %p136
      %s138 = ssub.s32 %s25, %s44
      %s139 = ssub.s32 %s26, %s40
      %s140 = sor.u32 %s138, %s139
      %s141 = ssub.s32 %s27, %s36
      %s142 = sor.u32 %s140, %s141
      %p143 = scmp.eq.s32.totalorder %s142, 0
      %s145 = sadd.s32 %s144, 1
      %s146 = scalar_select %p143, %s144, %s145
      %p149 = pneg %p143
      %p150 = scmp.eq.s32.totalorder %s18, 1
      %p151 = por %p149, %p150
      %p152 = scmp.ne.s32.totalorder %s144, %s147
      %p153 = scmp.eq.s32.totalorder %s18, 0
      %p154 = por %p152, %p153
      %p155 = scmp.ne.s32.totalorder %s144, %s147
      %p156 = scmp.eq.s32.totalorder %s23, 1
      %p157 = por %p155, %p156
      %p158 = scmp.ne.s32.totalorder %s147, %s148
      %p159 = scmp.eq.s32.totalorder %s23, 0
      %p160 = por %p158, %p159
      %p161 = scmp.ne.s32.totalorder %s147, %s148
      %p162 = scmp.eq.s32.totalorder %s24, 1
      %p163 = por %p161, %p162
      %p165 = scmp.ne.s32.totalorder %s148, %s164
      %p166 = scmp.eq.s32.totalorder %s24, 0
      %p167 = por %p165, %p166
      %p168 = scmp.le.s32.totalorder 1, %s18
      %p169 = scmp.lt.s32.totalorder %s18, 3
      %p170 = pnand %p168, %p169
      %p171 = pneg %p170
      // Predicated region
      $region9: #{tpu_custom_call.1} parent=5 // pred_check
        _
      $region10: #{tpu_custom_call.1} parent=5 // pred_check_branch
        %173 = sbr.rel (%p170) target = $region12
      $region11: #{tpu_custom_call.1} parent=5 // pred_region
        %s174 = ssub.s32 %s18, 1
        // Predicated region
        $region13: #{tpu_custom_call.1} parent=11 // pred_check
          %p175 = pneg %p58
        $region14: #{tpu_custom_call.1} parent=11 // pred_check_branch
          %177 = sbr.rel (%p175) target = $region16
        $region15: #{tpu_custom_call.1} parent=11 // pred_region
          %s179 = ssub.s32 128, 128
          %180 = vsyncadd [#allocation3], %s179
          %s181 = sshll.u32 [#allocation2], 4
          %s182 = int_to_ptr.vmem [resolvable:$true] %s181
          %187 = dma.hbm_to_vmem [thread:$0]  %s0, 128, %s182, [#allocation3], 64, 64, 4
        $region16: #{tpu_custom_call.1} parent=11 // pred_fallthru
          _
        // Predicated region
        $region17: #{tpu_custom_call.1} parent=11 // pred_check
          %p188 = pneg %p79
        $region18: #{tpu_custom_call.1} parent=11 // pred_check_branch
          %190 = sbr.rel (%p188) target = $region20
        $region19: #{tpu_custom_call.1} parent=11 // pred_region
          %s192 = ssub.s32 128, 128
          %193 = vsyncadd [#allocation6], %s192
          %s194 = sshll.u32 [#allocation5], 4
          %s195 = int_to_ptr.vmem [resolvable:$true] %s194
          %200 = dma.hbm_to_vmem [thread:$0]  %s1, 128, %s195, [#allocation6], 64, 64, 4
        $region20: #{tpu_custom_call.1} parent=11 // pred_fallthru
          _
        // Predicated region
        $region21: #{tpu_custom_call.1} parent=11 // pred_check
          %p201 = pneg %p100
        $region22: #{tpu_custom_call.1} parent=11 // pred_check_branch
          %203 = sbr.rel (%p201) target = $region24
        $region23: #{tpu_custom_call.1} parent=11 // pred_region
          %s205 = ssub.s32 128, 128
          %206 = vsyncadd [#allocation6], %s205
          %s207 = sshll.u32 [#allocation7], 4
          %s208 = int_to_ptr.vmem [resolvable:$true] %s207
          %213 = dma.hbm_to_vmem [thread:$0]  %s2, 128, %s208, [#allocation6], 64, 64, 4
        $region24: #{tpu_custom_call.1} parent=11 // pred_fallthru
          _
      $region12: #{tpu_custom_call.1} parent=5 // pred_fallthru
        _
      %p214 = scmp.lt.s32.totalorder %s18, 2
      // Predicated region
      $region25: #{tpu_custom_call.1} parent=5 // pred_check
        %p215 = pneg %p214
      $region26: #{tpu_custom_call.1} parent=5 // pred_check_branch
        %217 = sbr.rel (%p215) target = $region28
      $region27: #{tpu_custom_call.1} parent=5 // pred_region
        // Predicated region
        $region29: #{tpu_custom_call.1} parent=27 // pred_check
          %p218 = pneg %p124
        $region30: #{tpu_custom_call.1} parent=27 // pred_check_branch
          %220 = sbr.rel (%p218) target = $region32
        $region31: #{tpu_custom_call.1} parent=27 // pred_region
          %s221 = sand.u32 %s114, 1
          %s222 = scalar_lea.sflag [#allocation9], %s221
          %s223 = sand.u32 %s114, 1
          %s224 = smul.addr %s223, 48
          %s225 = scalar_lea.vmem [#allocation8], %s224
          %s226 = smul.u32 2, %s26
          %s228 = ssub.s32 768, 768
          %229 = vsyncadd %s222, %s228
          %s230 = sadd.s32 %s27, %s226
          %s231 = smul.addr %s25, 12
          %s232 = sadd.s32 %s230, %s231
          %s233 = smul.addr %s232, 64
          %s234 = scalar_lea.hbm %s3, %s233
          %s235 = sshll.u32 %s225, 4
          %s236 = int_to_ptr.vmem [resolvable:$true] %s235
          %241 = dma.hbm_to_vmem [thread:$0]  %s234, 768, %s236, %s222, 64, 64, 4
        $region32: #{tpu_custom_call.1} parent=27 // pred_fallthru
          _
      $region28: #{tpu_custom_call.1} parent=5 // pred_fallthru
        _
      %p242 = scmp.le.s32.totalorder 1, %s18
      %p243 = scmp.lt.s32.totalorder %s18, 3
      %p244 = pnand %p242, %p243
      %p245 = pneg %p244
      // Predicated region
      $region33: #{tpu_custom_call.1} parent=5 // pred_check
        _
      $region34: #{tpu_custom_call.1} parent=5 // pred_check_branch
        %247 = sbr.rel (%p244) target = $region36
      $region35: #{tpu_custom_call.1} parent=5 // pred_region
        %s248 = ssub.s32 %s18, 1
        // Predicated region
        $region37: #{tpu_custom_call.1} parent=35 // pred_check
          %p249 = pneg %p58
        $region38: #{tpu_custom_call.1} parent=35 // pred_check_branch
          %251 = sbr.rel (%p249) target = $region40
        $region39: #{tpu_custom_call.1} parent=35 // pred_region
          %252 = dma.done [#allocation3], 128
        $region40: #{tpu_custom_call.1} parent=35 // pred_fallthru
          _
        // Predicated region
        $region41: #{tpu_custom_call.1} parent=35 // pred_check
          %p253 = pneg %p79
        $region42: #{tpu_custom_call.1} parent=35 // pred_check_branch
          %255 = sbr.rel (%p253) target = $region44
        $region43: #{tpu_custom_call.1} parent=35 // pred_region
          %256 = dma.done [#allocation6], 128
        $region44: #{tpu_custom_call.1} parent=35 // pred_fallthru
          _
        // Predicated region
        $region45: #{tpu_custom_call.1} parent=35 // pred_check
          %p257 = pneg %p100
        $region46: #{tpu_custom_call.1} parent=35 // pred_check_branch
          %259 = sbr.rel (%p257) target = $region48
        $region47: #{tpu_custom_call.1} parent=35 // pred_region
          %260 = dma.done [#allocation6], 128
        $region48: #{tpu_custom_call.1} parent=35 // pred_fallthru
          _
        %s261 = sand.u32 %s117, 1
        %s262 = scalar_lea.sflag [#allocation9], %s261
        %s263 = sand.u32 %s117, 1
        %s264 = smul.addr %s263, 48
        %s265 = scalar_lea.vmem [#allocation8], %s264
        // Predicated region
        $region49: #{tpu_custom_call.1} parent=35 // pred_check
          %p266 = pneg %p130
        $region50: #{tpu_custom_call.1} parent=35 // pred_check_branch
          %268 = sbr.rel (%p266) target = $region52
        $region51: #{tpu_custom_call.1} parent=35 // pred_region
          %269 = dma.done %s262, 768
        $region52: #{tpu_custom_call.1} parent=35 // pred_fallthru
          _
        %p270 = pneg %p58
        %p271 = pneg %p55
        %p272 = pneg %p79
        %p273 = pneg %p76
        %p274 = pneg %p100
        %p275 = pneg %p97
        %s276 = sand.u32 %s117, 1
        %s277 = scalar_lea.sflag [#allocation9], %s276
        %s278 = sand.u32 %s117, 1
        %s279 = smul.addr %s278, 48
        %s280 = scalar_lea.vmem [#allocation8], %s279
        %p281 = pneg %p130
        %p282 = pneg %p127
        %p283 = pneg %p160
        %p284 = pneg %p157
        %s285 = sand.u32 %s147, 1
        %s286 = scalar_lea.sflag [#allocation4], %s285
        %s287 = sand.u32 %s147, 1
        %s288 = smul.addr %s287, 48
        %s289 = scalar_lea.vmem [#allocation10], %s288
        %s290 = smul.u32 2, %s29
        %s291 = smul.u32 2, %s29
        %v293 = vld [vmem:[%s265] sm:$0xf]
        %v294 = vld [vmem:[%s265 + $0x4] sm:$0xf]
        %s295 = scalar_lea.vmem %s265, 8 [#allocation8]
        %v296 = vld [vmem:[%s295] sm:$0xf]
        %v297 = vld [vmem:[%s295 + $0x4] sm:$0xf]
        %s298 = scalar_lea.vmem %s265, 16 [#allocation8]
        %v299 = vld [vmem:[%s298] sm:$0xf]
        %v300 = vld [vmem:[%s298 + $0x4] sm:$0xf]
        %s301 = scalar_lea.vmem %s265, 24 [#allocation8]
        %v302 = vld [vmem:[%s301] sm:$0xf]
        %v303 = vld [vmem:[%s301 + $0x4] sm:$0xf]
        %s304 = scalar_lea.vmem %s265, 32 [#allocation8]
        %v305 = vld [vmem:[%s304] sm:$0xf]
        %v306 = vld [vmem:[%s304 + $0x4] sm:$0xf]
        %s307 = scalar_lea.vmem %s265, 40 [#allocation8]
        %v308 = vld [vmem:[%s307] sm:$0xf]
        %v309 = vld [vmem:[%s307 + $0x4] sm:$0xf]
        %v312 = vunpack.c.l.b16 %v305
        %v313 = vunpack.c.l.b16 %v306
        %v314 = vpack.c.b16 %v313, %v312
        %v317 = vunpack.c.l.b16 %v308
        %v318 = vunpack.c.l.b16 %v309
        %v319 = vpack.c.b16 %v318, %v317
        %v322 = vunpack.c.l.b16 %v293
        %v323 = vunpack.c.l.b16 %v294
        %v324 = vpack.c.b16 %v323, %v322
        %v327 = vunpack.c.l.b16 %v299
        %v328 = vunpack.c.l.b16 %v300
        %v329 = vpack.c.b16 %v328, %v327
        %v332 = vunpack.c.l.b16 %v296
        %v333 = vunpack.c.l.b16 %v297
        %v334 = vpack.c.b16 %v333, %v332
        %v337 = vunpack.c.l.b16 %v302
        %v338 = vunpack.c.l.b16 %v303
        %v339 = vpack.c.b16 %v338, %v337
        %v340 = vld [vmem:[#allocation2] sm:$0xf]
        %v341 = vld [vmem:[#allocation2 + $0x4] sm:$0xf]
        %v342 = vld [vmem:[#allocation5] sm:$0xf]
        %v343 = vld [vmem:[#allocation5 + $0x4] sm:$0xf]
        %v346 = vunpack.c.l.b16 %v342
        %v347 = vunpack.c.l.b16 %v343
        %v348 = vpack.c.b16 %v347, %v346
        %vm350 = vcmask 130048
        %v352 = vsel %vm350, %v334, 0
        %v355 = vsel %vm350, %v339, 0
        %357 = vmatprep.subr.bf16.mxu0 0
        %358 = vmatpush1.bf16.msra.mxu0 %v348
        %359 = vmatprep.subr.bf16.mxu0 0
        %360 = vmatpush1.bf16.msra.mxu0 0
        %361 = vmatprep.subr.bf16.mxu0 0
        %362 = vmatpush1.bf16.msra.mxu0 0
        %363 = vmatprep.subr.bf16.mxu0 0
        %364 = vmatpush1.bf16.msra.mxu0 0
        %365 = vmatprep.subr.bf16.mxu0 0
        %366 = vmatpush1.bf16.msra.mxu0 0
        %367 = vmatprep.subr.bf16.mxu0 0
        %368 = vmatpush1.bf16.msra.mxu0 0
        %369 = vmatprep.subr.bf16.mxu0 0
        %370 = vmatpush1.bf16.msra.mxu0 0
        %371 = vmatprep.subr.bf16.mxu0 0
        %372 = vmatpush1.bf16.msra.mxu0 0
        %373 = vmatprep.subr.bf16.mxu0 0
        %374 = vmatpush1.bf16.msra.mxu0 0
        %375 = vmatprep.subr.bf16.mxu0 0
        %376 = vmatpush1.bf16.msra.mxu0 0
        %377 = vmatprep.subr.bf16.mxu0 0
        %378 = vmatpush1.bf16.msra.mxu0 0
        %379 = vmatprep.subr.bf16.mxu0 0
        %380 = vmatpush1.bf16.msra.mxu0 0
        %381 = vmatprep.subr.bf16.mxu0 0
        %382 = vmatpush1.bf16.msra.mxu0 0
        %383 = vmatprep.subr.bf16.mxu0 0
        %384 = vmatpush1.bf16.msra.mxu0 0
        %385 = vmatprep.subr.bf16.mxu0 0
        %386 = vmatpush1.bf16.msra.mxu0 0
        %387 = vmatprep.subr.bf16.mxu0 0
        %388 = vmatpush1.bf16.msra.mxu0 0
        %389 = vmatprep.mubr.bf16.mxu0 0
        %390 = vmatmul.mubr.bf16.gmra.mrb[0].mxu0 %v352
        %v391 = vpop.f32.mrb[0].mxu0
        %v392 = vadd.f32 0.0, %v391
        %v393 = vpop.f32.mrb[0].mxu0
        %v394 = vpop.f32.mrb[0].mxu0
        %v395 = vadd.f32 0.0, %v394
        %v396 = vpop.f32.mrb[0].mxu0
        %397 = vmatprep.mubr.bf16.mxu0 0
        %398 = vmatmul.mubr.bf16.gmra.mrb[0].mxu0 %v355
        %v399 = vpop.f32.mrb[0].mxu0
        %v400 = vadd.f32 0.0, %v399
        %v401 = vpop.f32.mrb[0].mxu0
        %v402 = vpop.f32.mrb[0].mxu0
        %v403 = vadd.f32 0.0, %v402
        %v404 = vpop.f32.mrb[0].mxu0
        %405 = vdwg.mxu0
        %v408 = vunpack.c.l.b16 %v340
        %v409 = vunpack.c.l.b16 %v341
        %v410 = vpack.c.b16 %v409, %v408
        %v413 = vsel %vm350, %v324, 0
        %v416 = vsel %vm350, %v329, 0
        %418 = vmatprep.subr.bf16.mxu0 0
        %419 = vmatpush1.bf16.msra.mxu0 %v410
        %420 = vmatprep.subr.bf16.mxu0 0
        %421 = vmatpush1.bf16.msra.mxu0 0
        %422 = vmatprep.subr.bf16.mxu0 0
        %423 = vmatpush1.bf16.msra.mxu0 0
        %424 = vmatprep.subr.bf16.mxu0 0
        %425 = vmatpush1.bf16.msra.mxu0 0
        %426 = vmatprep.subr.bf16.mxu0 0
        %427 = vmatpush1.bf16.msra.mxu0 0
        %428 = vmatprep.subr.bf16.mxu0 0
        %429 = vmatpush1.bf16.msra.mxu0 0
        %430 = vmatprep.subr.bf16.mxu0 0
        %431 = vmatpush1.bf16.msra.mxu0 0
        %432 = vmatprep.subr.bf16.mxu0 0
        %433 = vmatpush1.bf16.msra.mxu0 0
        %434 = vmatprep.subr.bf16.mxu0 0
        %435 = vmatpush1.bf16.msra.mxu0 0
        %436 = vmatprep.subr.bf16.mxu0 0
        %437 = vmatpush1.bf16.msra.mxu0 0
        %438 = vmatprep.subr.bf16.mxu0 0
        %439 = vmatpush1.bf16.msra.mxu0 0
        %440 = vmatprep.subr.bf16.mxu0 0
        %441 = vmatpush1.bf16.msra.mxu0 0
        %442 = vmatprep.subr.bf16.mxu0 0
        %443 = vmatpush1.bf16.msra.mxu0 0
        %444 = vmatprep.subr.bf16.mxu0 0
        %445 = vmatpush1.bf16.msra.mxu0 0
        %446 = vmatprep.subr.bf16.mxu0 0
        %447 = vmatpush1.bf16.msra.mxu0 0
        %448 = vmatprep.subr.bf16.mxu0 0
        %449 = vmatpush1.bf16.msra.mxu0 0
        %450 = vmatprep.mubr.bf16.mxu0 0
        %451 = vmatmul.mubr.bf16.gmra.mrb[0].mxu0 %v413
        %v452 = vpop.f32.mrb[0].mxu0
        %v453 = vadd.f32 %v392, %v452
        %v454 = vpop.f32.mrb[0].mxu0
        %v455 = vpop.f32.mrb[0].mxu0
        %v456 = vadd.f32 %v395, %v455
        %v457 = vpop.f32.mrb[0].mxu0
        %458 = vmatprep.mubr.bf16.mxu0 0
        %459 = vmatmul.mubr.bf16.gmra.mrb[0].mxu0 %v416
        %v460 = vpop.f32.mrb[0].mxu0
        %v461 = vadd.f32 %v400, %v460
        %v462 = vpop.f32.mrb[0].mxu0
        %v463 = vpop.f32.mrb[0].mxu0
        %v464 = vadd.f32 %v403, %v463
        %v465 = vpop.f32.mrb[0].mxu0
        %466 = vdwg.mxu0
        %v467 = vpack.c.bf16 %v456, %v453
        %v468 = vpack.c.bf16 %v464, %v461
        %v469 = vld [vmem:[#allocation7] sm:$0xf]
        %v470 = vld [vmem:[#allocation7 + $0x4] sm:$0xf]
        %v473 = vunpack.c.l.b16 %v469
        %v474 = vunpack.c.l.b16 %v470
        %v475 = vpack.c.b16 %v474, %v473
        %v478 = vsel %vm350, %v314, 0
        %v481 = vsel %vm350, %v319, 0
        %483 = vmatprep.subr.bf16.mxu0 0
        %484 = vmatpush1.bf16.msra.mxu0 %v475
        %485 = vmatprep.subr.bf16.mxu0 0
        %486 = vmatpush1.bf16.msra.mxu0 0
        %487 = vmatprep.subr.bf16.mxu0 0
        %488 = vmatpush1.bf16.msra.mxu0 0
        %489 = vmatprep.subr.bf16.mxu0 0
        %490 = vmatpush1.bf16.msra.mxu0 0
        %491 = vmatprep.subr.bf16.mxu0 0
        %492 = vmatpush1.bf16.msra.mxu0 0
        %493 = vmatprep.subr.bf16.mxu0 0
        %494 = vmatpush1.bf16.msra.mxu0 0
        %495 = vmatprep.subr.bf16.mxu0 0
        %496 = vmatpush1.bf16.msra.mxu0 0
        %497 = vmatprep.subr.bf16.mxu0 0
        %498 = vmatpush1.bf16.msra.mxu0 0
        %499 = vmatprep.subr.bf16.mxu0 0
        %500 = vmatpush1.bf16.msra.mxu0 0
        %501 = vmatprep.subr.bf16.mxu0 0
        %502 = vmatpush1.bf16.msra.mxu0 0
        %503 = vmatprep.subr.bf16.mxu0 0
        %504 = vmatpush1.bf16.msra.mxu0 0
        %505 = vmatprep.subr.bf16.mxu0 0
        %506 = vmatpush1.bf16.msra.mxu0 0
        %507 = vmatprep.subr.bf16.mxu0 0
        %508 = vmatpush1.bf16.msra.mxu0 0
        %509 = vmatprep.subr.bf16.mxu0 0
        %510 = vmatpush1.bf16.msra.mxu0 0
        %511 = vmatprep.subr.bf16.mxu0 0
        %512 = vmatpush1.bf16.msra.mxu0 0
        %513 = vmatprep.subr.bf16.mxu0 0
        %514 = vmatpush1.bf16.msra.mxu0 0
        %515 = vmatprep.mubr.bf16.mxu0 0
        %516 = vmatmul.mubr.bf16.gmra.mrb[0].mxu0 %v478
        %v517 = vpop.f32.mrb[0].mxu0
        %v518 = vadd.f32 0.0, %v517
        %v519 = vpop.f32.mrb[0].mxu0
        %v520 = vpop.f32.mrb[0].mxu0
        %v521 = vadd.f32 0.0, %v520
        %v522 = vpop.f32.mrb[0].mxu0
        %523 = vmatprep.mubr.bf16.mxu0 0
        %524 = vmatmul.mubr.bf16.gmra.mrb[0].mxu0 %v481
        %v525 = vpop.f32.mrb[0].mxu0
        %v526 = vadd.f32 0.0, %v525
        %v527 = vpop.f32.mrb[0].mxu0
        %v528 = vpop.f32.mrb[0].mxu0
        %v529 = vadd.f32 0.0, %v528
        %v530 = vpop.f32.mrb[0].mxu0
        %531 = vdwg.mxu0
        %v532 = vpack.c.bf16 %v521, %v518
        %v533 = vpack.c.bf16 %v529, %v526
        %v535 = vunpack.c.l.b16 %v467
        %v536 = vunpack.c.h.b16 %v467
        %v537 = vpack.c.b16 %v535, %v535
        %v538 = vpack.c.b16 %v536, %v536
        %vm541 = vcmask 257024
        %542 = vst.msk [vmem:[%s289] sm:$0xf] %vm541, %v537
        %543 = vst.msk [vmem:[%s289 + $0x4] sm:$0xf] %vm541, %v538
        %v545 = vunpack.c.l.b16 %v468
        %v546 = vunpack.c.h.b16 %v468
        %v547 = vpack.c.b16 %v545, %v545
        %v548 = vpack.c.b16 %v546, %v546
        %s551 = scalar_lea.vmem %s289, 8 [#allocation10]
        %552 = vst.msk [vmem:[%s551] sm:$0xf] %vm541, %v547
        %553 = vst.msk [vmem:[%s551 + $0x4] sm:$0xf] %vm541, %v548
        %v555 = vunpack.c.l.b16 %v532
        %v556 = vunpack.c.h.b16 %v532
        %v557 = vpack.c.b16 %v555, %v555
        %v558 = vpack.c.b16 %v556, %v556
        %s561 = scalar_lea.vmem %s289, 16 [#allocation10]
        %562 = vst.msk [vmem:[%s561] sm:$0xf] %vm541, %v557
        %563 = vst.msk [vmem:[%s561 + $0x4] sm:$0xf] %vm541, %v558
        %s564 = scalar_lea.vmem %s289, 24 [#allocation10]
        %565 = vst.msk [vmem:[%s564] sm:$0xf] %vm541, %v557
        %566 = vst.msk [vmem:[%s564 + $0x4] sm:$0xf] %vm541, %v558
        %v568 = vunpack.c.l.b16 %v533
        %v569 = vunpack.c.h.b16 %v533
        %v570 = vpack.c.b16 %v568, %v568
        %v571 = vpack.c.b16 %v569, %v569
        %s574 = scalar_lea.vmem %s289, 32 [#allocation10]
        %575 = vst.msk [vmem:[%s574] sm:$0xf] %vm541, %v570
        %576 = vst.msk [vmem:[%s574 + $0x4] sm:$0xf] %vm541, %v571
        %s577 = scalar_lea.vmem %s289, 40 [#allocation10]
        %578 = vst.msk [vmem:[%s577] sm:$0xf] %vm541, %v570
        %579 = vst.msk [vmem:[%s577 + $0x4] sm:$0xf] %vm541, %v571
        %s580 = sand.u32 %s147, 1
        %s581 = scalar_lea.sflag [#allocation4], %s580
        %s582 = sand.u32 %s147, 1
        %s583 = smul.addr %s582, 48
        %s584 = scalar_lea.vmem [#allocation10], %s583
        // Predicated region
        $region53: #{tpu_custom_call.1} parent=35 // pred_check
          %p585 = pneg %p157
        $region54: #{tpu_custom_call.1} parent=35 // pred_check_branch
          %587 = sbr.rel (%p585) target = $region56
        $region55: #{tpu_custom_call.1} parent=35 // pred_region
          %s588 = smul.u32 2, %s29
          %s590 = ssub.s32 768, 768
          %591 = vsyncadd %s581, %s590
          %s592 = sadd.s32 %s30, %s588
          %s593 = smul.addr %s28, 12
          %s594 = sadd.s32 %s592, %s593
          %s595 = smul.addr %s594, 64
          %s596 = scalar_lea.hbm %s4, %s595
          %s597 = sshll.u32 %s584, 4
          %s598 = int_to_ptr.vmem [resolvable:$true] %s597
          %603 = dma.vmem_to_hbm [thread:$0]  %s598, 768, %s596, %s581, 64, 64, 4
        $region56: #{tpu_custom_call.1} parent=35 // pred_fallthru
          _
      $region36: #{tpu_custom_call.1} parent=5 // pred_fallthru
        _
      %p604 = scmp.le.s32.totalorder 2, %s18
      // Predicated region
      $region57: #{tpu_custom_call.1} parent=5 // pred_check
        %p605 = pneg %p604
      $region58: #{tpu_custom_call.1} parent=5 // pred_check_branch
        %607 = sbr.rel (%p605) target = $region60
      $region59: #{tpu_custom_call.1} parent=5 // pred_region
        %s608 = ssub.s32 %s18, 2
        // Predicated region
        $region61: #{tpu_custom_call.1} parent=59 // pred_check
          %p609 = pneg %p163
        $region62: #{tpu_custom_call.1} parent=59 // pred_check_branch
          %611 = sbr.rel (%p609) target = $region64
        $region63: #{tpu_custom_call.1} parent=59 // pred_region
          %s612 = sand.u32 %s148, 1
          %s613 = scalar_lea.sflag [#allocation4], %s612
          %s614 = sand.u32 %s148, 1
          %s615 = smul.addr %s614, 48
          %s616 = scalar_lea.vmem [#allocation10], %s615
          %617 = dma.done %s613, 768
        $region64: #{tpu_custom_call.1} parent=59 // pred_fallthru
          _
      $region60: #{tpu_custom_call.1} parent=5 // pred_fallthru
        _
    $region6: #{tpu_custom_call.1} parent=1 // loop_footer
      %s22 = sadd.s32 1, %s18
    $region7: #{tpu_custom_call.1} parent=1 // loop_footer_branch
      %17 = sbr.rel target = $region3
    $region8: #{tpu_custom_call.1} parent=1 // loop_exit
      _
    %618 = vsyncpa [#allocation3], 1
    %s619 = scalar_lea.sflag [#allocation3], 1
    %620 = vsyncpa %s619, 1
    %621 = vsyncpa [#allocation6], 1
    %622 = vsyncpa [#allocation9], 1
    %s623 = scalar_lea.sflag [#allocation9], 1
    %624 = vsyncpa %s623, 1
    %625 = vsyncpa [#allocation4], 1
    %s626 = scalar_lea.sflag [#allocation4], 1
    %627 = vsyncpa %s626, 1

</llo_original>
